<compile_context>
chip_gen: v5e
topology: v5e:2x2
jax: 0.10.0
libtpu: 0.0.40
codegen_flags: <defaults>
</compile_context>

<pallas_src>
import functools

import jax
import jax.numpy as jnp
from jax.experimental import pallas as pl
from jax.experimental.pallas import tpu as pltpu


def _fused_meta_kernel(x_ref, w_ref, b_ref, ow_ref, ob_ref, *, io):
    # x_ref: (TM, C)  row tile of flattened mk
    # w_ref: (C, P)   fused [generate_weight ; generate_bias], P lane-dense (resident)
    # b_ref: (1, P)   fused bias row (resident)
    # ow_ref: (TM, IO)  weight output tile
    # ob_ref: (TM, O)   bias output tile
    acc = jax.lax.dot_general(
        x_ref[...], w_ref[...],
        dimension_numbers=(((1,), (0,)), ((), ())),   # (TM,C) x (C,P) -> (TM,P), no transpose
        preferred_element_type=jnp.float32,
    )
    acc = acc + b_ref[...]
    ow_ref[...] = acc[:, :io].astype(ow_ref.dtype)
    ob_ref[...] = acc[:, io:].astype(ob_ref.dtype)


def _round_up(x, m):
    return ((x + m - 1) // m) * m


def fuse_meta_params(w_weight, w_bias, b_weight, b_bias):
    """One-time parameter setup: fuse the two torch Linears into (C, P) + (1, P).

    w_weight: (IO, C) torch generate_weight.weight
    w_bias:   (IO,)   torch generate_weight.bias
    b_weight: (O, C)  torch generate_bias.weight
    b_bias:   (O,)    torch generate_bias.bias
    """
    w_cat = jnp.concatenate([w_weight, b_weight], axis=0)          # (P, C)
    w_fused = jnp.transpose(w_cat)                                  # (C, P) lane-dense P
    b_fused = jnp.concatenate([w_bias, b_bias], axis=0)[None, :]    # (1, P)
    return w_fused, b_fused


def _pick_vmem_limit():
    # Generation-aware VMEM budget: ~3/4 of physical, capped at 96 MiB.
    # Falls back to the compiler default if the query is unavailable.
    try:
        cap = int(pltpu.get_tpu_info().vmem_capacity_bytes)
    except Exception:
        return None
    if cap <= 0:
        return None
    return min((cap * 3) // 4, 96 * 1024 * 1024)


def meta_weight_and_initial_forward(mk, w_fused, b_fused, input_dim, output_dim,
                                    *, block_rows=1024):
    """Forward pass of meta_weight_and_initial (bias=True).

    mk:      (B, N, C) float32, C == meta_dim
    w_fused: (C, IO+O) fused generator weight (from fuse_meta_params)
    b_fused: (1, IO+O) fused generator bias
    returns: (weight (B, N, input_dim, output_dim), bias (B, 1, N, output_dim))
    """
    B, N, C = mk.shape
    IO = input_dim * output_dim
    O = output_dim
    P = IO + O
    assert w_fused.shape == (C, P)
    assert b_fused.shape == (1, P)

    # Flatten (B, N) into one row axis; no padding — the final partial block is
    # read padded / written clipped by Pallas.
    M = B * N
    x = mk.reshape(M, C)

    TM = min(block_rows, _round_up(M, 8))
    TM = _round_up(TM, 8)
    grid = (pl.cdiv(M, TM),)

    kernel = functools.partial(_fused_meta_kernel, io=IO)

    w_out, b_out = pl.pallas_call(
        kernel,
        out_shape=(
            jax.ShapeDtypeStruct((M, IO), mk.dtype),
            jax.ShapeDtypeStruct((M, O), mk.dtype),
        ),
        grid_spec=pltpu.PrefetchScalarGridSpec(
            num_scalar_prefetch=0,
            grid=grid,
            in_specs=[
                pl.BlockSpec((TM, C), lambda i: (i, 0)),   # row tile of mk
                pl.BlockSpec((C, P), lambda i: (0, 0)),    # fused weight (resident)
                pl.BlockSpec((1, P), lambda i: (0, 0)),    # fused bias (resident)
            ],
            out_specs=[
                pl.BlockSpec((TM, IO), lambda i: (i, 0)),  # weight output
                pl.BlockSpec((TM, O), lambda i: (i, 0)),   # bias output
            ],
        ),
        compiler_params=pltpu.CompilerParams(
            dimension_semantics=("parallel",),             # row tiles are independent
            vmem_limit_bytes=_pick_vmem_limit(),
        ),
    )(x, w_fused, b_fused)

    # Pure-metadata reshapes (no HBM traffic).
    weight = w_out.reshape(B, N, input_dim, output_dim)
    bias = b_out.reshape(B, 1, N, output_dim)
    return weight, bias


def _reference(mk, w_weight, w_bias, b_weight, b_bias, input_dim, output_dim):
    B, N, C = mk.shape
    w = jnp.einsum("bnc,oc->bno", mk, w_weight) + w_bias             # (B, N, IO)
    weight = w.reshape(B, N, input_dim, output_dim)
    b = jnp.einsum("bnc,oc->bno", mk, b_weight) + b_bias             # (B, N, O)
    bias = b.reshape(B, 1, N, output_dim)
    return weight, bias


if __name__ == "__main__":
    B, N, meta_dim = 2, 16, 32
    input_dim, output_dim = 4, 8
    IO = input_dim * output_dim

    key = jax.random.PRNGKey(0)
    k_mk, k_ww, k_wb, k_bw, k_bb = jax.random.split(key, 5)

    mk = jax.random.normal(k_mk, (B, N, meta_dim), dtype=jnp.float32)

    # Deterministic torch-Linear-style init: U(-1/sqrt(fan_in), 1/sqrt(fan_in)).
    bound = 1.0 / (meta_dim ** 0.5)
    w_weight = jax.random.uniform(k_ww, (IO, meta_dim), jnp.float32, -bound, bound)
    w_bias = jax.random.uniform(k_wb, (IO,), jnp.float32, -bound, bound)
    b_weight = jax.random.uniform(k_bw, (output_dim, meta_dim), jnp.float32, -bound, bound)
    b_bias = jax.random.uniform(k_bb, (output_dim,), jnp.float32, -bound, bound)

    # One-time parameter fusion (hoisted out of the forward path).
    w_fused, b_fused = fuse_meta_params(w_weight, w_bias, b_weight, b_bias)
    w_fused = jax.block_until_ready(w_fused)
    b_fused = jax.block_until_ready(b_fused)

    weight, bias = meta_weight_and_initial_forward(
        mk, w_fused, b_fused, input_dim, output_dim)
    weight = jax.block_until_ready(weight)
    bias = jax.block_until_ready(bias)

    ref_w, ref_b = _reference(mk, w_weight, w_bias, b_weight, b_bias, input_dim, output_dim)

    assert weight.shape == (B, N, input_dim, output_dim)
    assert bias.shape == (B, 1, N, output_dim)
    assert jnp.allclose(weight, ref_w, atol=1e-5, rtol=1e-5), "weight mismatch vs reference"
    assert jnp.allclose(bias, ref_b, atol=1e-5, rtol=1e-5), "bias mismatch vs reference"

    print("KERNEL_OK")
</pallas_src>

<mosaic_0001>
module attributes {stable_mosaic.version = 11 : i64} {
  func.func @_fused_meta_kernel(%arg0: i32, %arg1: memref<32x32xf32, #tpu.memory_space<vmem>>, %arg2: memref<32x40xf32, #tpu.memory_space<vmem>>, %arg3: memref<1x40xf32, #tpu.memory_space<vmem>>, %arg4: memref<32x32xf32, #tpu.memory_space<vmem>>, %arg5: memref<32x8xf32, #tpu.memory_space<vmem>>) attributes {dimension_semantics = [#tpu.dimension_semantics<parallel>], iteration_bounds = array<i64: 1>, scalar_prefetch = 0 : i64, scratch_operands = 0 : i64, tpu.core_type = #tpu.core_type<tc>, window_params = [{transform_indices = @transform_0, window_bounds = array<i64: 32, 32>}, {pipeline_mode = #tpu.pipeline_mode<synchronous>, transform_indices = @transform_1, window_bounds = array<i64: 32, 40>}, {pipeline_mode = #tpu.pipeline_mode<synchronous>, transform_indices = @transform_2, window_bounds = array<i64: 1, 40>}, {transform_indices = @transform_3, window_bounds = array<i64: 32, 32>}, {transform_indices = @transform_4, window_bounds = array<i64: 32, 8>}]} {
    %c0 = arith.constant 0 : index
    %c0_0 = arith.constant 0 : index
    %0 = vector.load %arg1[%c0, %c0_0] : memref<32x32xf32, #tpu.memory_space<vmem>>, vector<32x32xf32>
    %c0_1 = arith.constant 0 : index
    %c0_2 = arith.constant 0 : index
    %1 = vector.load %arg2[%c0_1, %c0_2] : memref<32x40xf32, #tpu.memory_space<vmem>>, vector<32x40xf32>
    %cst = arith.constant dense<0.000000e+00> : vector<32x40xf32>
    %2 = tpu.matmul %0, %1, %cst {dimension_numbers = #tpu.dot_dimension_numbers<[1], [0], [0], [1], [0, 0, 1, 1], [], []>} : vector<32x32xf32>, vector<32x40xf32>, vector<32x40xf32> -> vector<32x40xf32>
    %c0_3 = arith.constant 0 : index
    %c0_4 = arith.constant 0 : index
    %3 = vector.load %arg3[%c0_3, %c0_4] : memref<1x40xf32, #tpu.memory_space<vmem>>, vector<1x40xf32>
    %4 = vector.broadcast %3 : vector<1x40xf32> to vector<32x40xf32>
    %5 = arith.addf %2, %4 : vector<32x40xf32>
    %6 = vector.extract_strided_slice %5 {offsets = [0, 0], sizes = [32, 32], strides = [1, 1]} : vector<32x40xf32> to vector<32x32xf32>
    %c0_5 = arith.constant 0 : index
    %c0_6 = arith.constant 0 : index
    %7 = vector.load %arg4[%c0_5, %c0_6] : memref<32x32xf32, #tpu.memory_space<vmem>>, vector<32x32xf32>
    tpu.vector_store %arg4[%c0_5, %c0_6], %6 {strides = array<i32>} : memref<32x32xf32, #tpu.memory_space<vmem>>, vector<32x32xf32>,
    %8 = vector.extract_strided_slice %5 {offsets = [0, 32], sizes = [32, 8], strides = [1, 1]} : vector<32x40xf32> to vector<32x8xf32>
    %c0_7 = arith.constant 0 : index
    %c0_8 = arith.constant 0 : index
    %9 = vector.load %arg5[%c0_7, %c0_8] : memref<32x8xf32, #tpu.memory_space<vmem>>, vector<32x8xf32>
    tpu.vector_store %arg5[%c0_7, %c0_8], %8 {strides = array<i32>} : memref<32x8xf32, #tpu.memory_space<vmem>>, vector<32x8xf32>,
    return
  }
  func.func @transform_0(%arg0: i32) -> (i32, i32) {
    %c0_i32 = arith.constant 0 : i32
    %c0_i32_0 = arith.constant 0 : i32
    return %arg0, %c0_i32 : i32, i32
  }
  func.func @transform_1(%arg0: i32) -> (i32, i32) {
    %c0_i32 = arith.constant 0 : i32
    %c0_i32_0 = arith.constant 0 : i32
    %c0_i32_1 = arith.constant 0 : i32
    return %c0_i32, %c0_i32_0 : i32, i32
  }
  func.func @transform_2(%arg0: i32) -> (i32, i32) {
    %c0_i32 = arith.constant 0 : i32
    %c0_i32_0 = arith.constant 0 : i32
    %c0_i32_1 = arith.constant 0 : i32
    return %c0_i32, %c0_i32_0 : i32, i32
  }
  func.func @transform_3(%arg0: i32) -> (i32, i32) {
    %c0_i32 = arith.constant 0 : i32
    %c0_i32_0 = arith.constant 0 : i32
    return %arg0, %c0_i32 : i32, i32
  }
  func.func @transform_4(%arg0: i32) -> (i32, i32) {
    %c0_i32 = arith.constant 0 : i32
    %c0_i32_0 = arith.constant 0 : i32
    return %arg0, %c0_i32 : i32, i32
  }
}

</mosaic_0001>

<llo_original>
// kernel: tpu_custom_call.1
$region0: #{tpu_custom_call.1}
  #allocation0 [shape = 'u32[]', space=smem, size = 0x4, offset = 0x4, fixed_abs, tag = 'smem constant byte address 0x4 - core index']
  #allocation1 [shape = 'u32[72,128]{1,0:T(1,128)}', space=vmem, size = 0x9000, scoped, tag = 'internal scratch']
  %s0 = inlined_call_operand.hbm [shape: f32[32,32], index: 0, kind: input, shape index: {}]
  %s1 = inlined_call_operand.hbm [shape: f32[32,40], index: 1, kind: input, shape index: {}]
  %s2 = inlined_call_operand.vmem [shape: f32[1,40], index: 2, kind: input, shape index: {}]
  %s3 = inlined_call_operand.hbm [shape: f32[32,32], index: 3, kind: output, shape index: {0}]
  %s4 = inlined_call_operand.vmem [shape: f32[32,8], index: 4, kind: output, shape index: {1}]
  %5 = xla_tuple %s3, %s4
  %s6 = sld [smem:[#allocation0]]
  $region38: #{tpu_custom_call.1} parent=0
    _
  %s8 = ssub.s32 1, %s6
  %s9 = scalar_select 0, %s8, %s6
  $region1: #{tpu_custom_call.1} parent=0
    #allocation2 [shape = 'u8[16384]{0}', space=vmem, size = 0x4000, scoped, tag = 'input window, operand 0, single buffered']
    #allocation3 [shape = 's32[1]{0}', space=sflag, size = 0x4, scoped, tag = 'scoped memory for tpu_custom_call.1']
    #allocation4 [shape = 's32[1]{0}', space=sflag, size = 0x4, scoped, tag = 'scoped memory for tpu_custom_call.1']
    #allocation5 [shape = 'u8[16384]{0}', space=vmem, size = 0x4000, scoped, tag = 'input window, operand 1, single buffered']
    #allocation6 [shape = 's32[1]{0}', space=sflag, size = 0x4, scoped, tag = 'scoped memory for tpu_custom_call.1']
    #allocation7 [shape = 'u8[16384]{0}', space=vmem, size = 0x4000, scoped, tag = 'output window, operand 0, single buffered']
    %10 = vsyncpa [#allocation3], 0
    %11 = vsyncpa [#allocation6], 0
    %12 = vsyncpa [#allocation4], 0
    // Predicated region
    $region2: #{tpu_custom_call.1} parent=1 // pred_check
      _
    $region3: #{tpu_custom_call.1} parent=1 // pred_check_branch
      %14 = sbr.rel (0) target = $region5
    $region4: #{tpu_custom_call.1} parent=1 // pred_region
      %16 = vsyncadd [#allocation3], 0
      %s17 = sshll.u32 %s0, 4
      %s18 = int_to_ptr.hbm [resolvable:$true] %s17
      %s19 = sshll.u32 [#allocation2], 4
      %s20 = int_to_ptr.vmem [resolvable:$true] %s19
      %25 = dma.hbm_to_vmem [thread:$0]  %s18, 512, %s20, [#allocation3], 128, 128, 8
    $region5: #{tpu_custom_call.1} parent=1 // pred_fallthru
      _
    // Predicated region
    $region6: #{tpu_custom_call.1} parent=1 // pred_check
      _
    $region7: #{tpu_custom_call.1} parent=1 // pred_check_branch
      %27 = sbr.rel (0) target = $region9
    $region8: #{tpu_custom_call.1} parent=1 // pred_region
      %29 = vsyncadd [#allocation6], 0
      %s30 = sshll.u32 %s1, 4
      %s31 = int_to_ptr.hbm [resolvable:$true] %s30
      %s32 = sshll.u32 [#allocation5], 4
      %s33 = int_to_ptr.vmem [resolvable:$true] %s32
      %38 = dma.hbm_to_vmem [thread:$0]  %s31, 512, %s33, [#allocation6], 128, 128, 8
    $region9: #{tpu_custom_call.1} parent=1 // pred_fallthru
      _
    // Predicated region
    $region10: #{tpu_custom_call.1} parent=1 // pred_check
      _
    $region11: #{tpu_custom_call.1} parent=1 // pred_check_branch
      %40 = sbr.rel (0) target = $region13
    $region12: #{tpu_custom_call.1} parent=1 // pred_region
      _
    $region13: #{tpu_custom_call.1} parent=1 // pred_fallthru
      _
    // Predicated region
    $region14: #{tpu_custom_call.1} parent=1 // pred_check
      _
    $region15: #{tpu_custom_call.1} parent=1 // pred_check_branch
      %42 = sbr.rel (0) target = $region17
    $region16: #{tpu_custom_call.1} parent=1 // pred_region
      %44 = dma.done [#allocation3], 512
    $region17: #{tpu_custom_call.1} parent=1 // pred_fallthru
      _
    // Predicated region
    $region18: #{tpu_custom_call.1} parent=1 // pred_check
      _
    $region19: #{tpu_custom_call.1} parent=1 // pred_check_branch
      %46 = sbr.rel (0) target = $region21
    $region20: #{tpu_custom_call.1} parent=1 // pred_region
      %48 = dma.done [#allocation6], 512
    $region21: #{tpu_custom_call.1} parent=1 // pred_fallthru
      _
    %v49 = vld [vmem:[#allocation2] sm:$0xff]
    %v50 = vld [vmem:[#allocation2 + $0x8] sm:$0xff]
    %v51 = vld [vmem:[#allocation2 + $0x10] sm:$0xff]
    %v52 = vld [vmem:[#allocation2 + $0x18] sm:$0xff]
    %v53 = vld [vmem:[#allocation5] sm:$0xff]
    %v54 = vld [vmem:[#allocation5 + $0x8] sm:$0xff]
    %v55 = vld [vmem:[#allocation5 + $0x10] sm:$0xff]
    %v56 = vld [vmem:[#allocation5 + $0x18] sm:$0xff]
    %v57 = vld [vmem:[%s2] sm:$0x1]
    %v59 = vperm.slane %v57, 0
    %vm61 = vcmask 261120
    %v63 = vsel %vm61, %v49, 0
    %v66 = vsel %vm61, %v50, 0
    %v69 = vsel %vm61, %v51, 0
    %v72 = vsel %vm61, %v52, 0
    %74 = vmatpush.msra.mxu0 0.0
    %75 = vmatpush.msra.mxu0 0.0
    %76 = vmatpush.msra.mxu0 0.0
    %77 = vmatpush.msra.mxu0 0.0
    %78 = vmatpush.msra.mxu0 0.0
    %79 = vmatpush.msra.mxu0 0.0
    %80 = vmatpush.msra.mxu0 0.0
    %81 = vmatpush.msra.mxu0 0.0
    %82 = vmatpush.msra.mxu0 0.0
    %83 = vmatpush.msra.mxu0 0.0
    %84 = vmatpush.msra.mxu0 0.0
    %85 = vmatpush.msra.mxu0 0.0
    %86 = vmatpush.msra.mxu0 %v56
    %87 = vmatpush.msra.mxu0 %v55
    %88 = vmatpush.msra.mxu0 %v54
    %89 = vmatpush.msra.mxu0 %v53
    %90 = vmatmul.f32.gmra.mxu0 %v63
    %v91 = vpop.f32.mrf.mxu0
    %v92 = vadd.f32 %v59, %v91
    %93 = vmatmul.f32.gmra.mxu0 %v66
    %v94 = vpop.f32.mrf.mxu0
    %v95 = vadd.f32 %v59, %v94
    %96 = vmatmul.f32.gmra.mxu0 %v69
    %v97 = vpop.f32.mrf.mxu0
    %v98 = vadd.f32 %v59, %v97
    %99 = vmatmul.f32.gmra.mxu0 %v72
    %v100 = vpop.f32.mrf.mxu0
    %v101 = vadd.f32 %v59, %v100
    %102 = vdwg.mxu0
    %103 = vst.msk [vmem:[#allocation7] sm:$0xff] %vm61, %v92
    %104 = vst.msk [vmem:[#allocation7 + $0x8] sm:$0xff] %vm61, %v95
    %105 = vst.msk [vmem:[#allocation7 + $0x10] sm:$0xff] %vm61, %v98
    %106 = vst.msk [vmem:[#allocation7 + $0x18] sm:$0xff] %vm61, %v101
    %111 = vrot.lane.b32.xlu0 %v92, 96
    %v112 = vpop.permute.xlu0 %111
    %113 = vrot.lane.b32.xlu0 %v95, 96
    %v114 = vpop.permute.xlu0 %113
    %115 = vrot.lane.b32.xlu0 %v98, 96
    %v116 = vpop.permute.xlu0 %115
    %117 = vrot.lane.b32.xlu0 %v101, 96
    %v118 = vpop.permute.xlu0 %117
    %vm123 = vcmask 64512
    %124 = vst.msk [vmem:[%s4] sm:$0xff] %vm123, %v112
    %125 = vst.msk [vmem:[%s4 + $0x8] sm:$0xff] %vm123, %v114
    %126 = vst.msk [vmem:[%s4 + $0x10] sm:$0xff] %vm123, %v116
    %127 = vst.msk [vmem:[%s4 + $0x18] sm:$0xff] %vm123, %v118
    // Predicated region
    $region22: #{tpu_custom_call.1} parent=1 // pred_check
      _
    $region23: #{tpu_custom_call.1} parent=1 // pred_check_branch
      %129 = sbr.rel (0) target = $region25
    $region24: #{tpu_custom_call.1} parent=1 // pred_region
      %131 = vsyncadd [#allocation4], 0
      %s132 = sshll.u32 [#allocation7], 4
      %s133 = int_to_ptr.vmem [resolvable:$true] %s132
      %s134 = sshll.u32 %s3, 4
      %s135 = int_to_ptr.hbm [resolvable:$true] %s134
      %140 = dma.vmem_to_hbm [thread:$0]  %s133, 512, %s135, [#allocation4], 128, 128, 8
    $region25: #{tpu_custom_call.1} parent=1 // pred_fallthru
      _
    // Predicated region
    $region26: #{tpu_custom_call.1} parent=1 // pred_check
      _
    $region27: #{tpu_custom_call.1} parent=1 // pred_check_branch
      %142 = sbr.rel (0) target = $region29
    $region28: #{tpu_custom_call.1} parent=1 // pred_region
      _
    $region29: #{tpu_custom_call.1} parent=1 // pred_fallthru
      _
    // Predicated region
    $region30: #{tpu_custom_call.1} parent=1 // pred_check
      _
    $region31: #{tpu_custom_call.1} parent=1 // pred_check_branch
      %144 = sbr.rel (0) target = $region33
    $region32: #{tpu_custom_call.1} parent=1 // pred_region
      %146 = dma.done [#allocation4], 512
    $region33: #{tpu_custom_call.1} parent=1 // pred_fallthru
      _
    // Predicated region
    $region34: #{tpu_custom_call.1} parent=1 // pred_check
      _
    $region35: #{tpu_custom_call.1} parent=1 // pred_check_branch
      %148 = sbr.rel (0) target = $region37
    $region36: #{tpu_custom_call.1} parent=1 // pred_region
      _
    $region37: #{tpu_custom_call.1} parent=1 // pred_fallthru
      _
    %149 = vsyncpa [#allocation3], 1
    %150 = vsyncpa [#allocation6], 1
    %151 = vsyncpa [#allocation4], 1

</llo_original>
